<compile_context>
chip_gen: v6e
topology: v6e:2x2x1
jax: 0.10.0
libtpu: 0.0.40
codegen_flags: <defaults>
</compile_context>

<pallas_src>
import math

import jax
import jax.numpy as jnp
from jax.experimental import pallas as pl
from jax.experimental.pallas import tpu as pltpu


def _build_pe(d_model: int, max_len: int) -> jnp.ndarray:
    """Sinusoidal positional-encoding buffer, exactly as the PyTorch __init__
    builds it (d_model assumed even, like the original). Shape [max_len, d_model],
    kept in float32 like the registered buffer."""
    position = jnp.arange(max_len, dtype=jnp.float32)[:, None]          # [L, 1]
    div_term = jnp.exp(
        jnp.arange(0, d_model, 2, dtype=jnp.float32)
        * (-math.log(10000.0) / d_model)
    )                                                                    # [D/2]
    angles = position * div_term                                         # [L, D/2]
    pe = jnp.zeros((max_len, d_model), dtype=jnp.float32)
    pe = pe.at[:, 0::2].set(jnp.sin(angles))
    pe = pe.at[:, 1::2].set(jnp.cos(angles))
    return pe


def _pe_add_kernel(x_ref, pe_ref, o_ref):
    # x_ref / o_ref: [ts, tb, D] VMEM tile;  pe_ref: [ts, D] f32 VMEM tile.
    # Cast pe on the VPU (free under the DMA) and broadcast over the batch
    # (sublane) axis.  NOTE: the broadcast can materialize one x-sized temp in
    # VMEM; that is accounted for in the _choose_tiles VMEM budget.
    pe = pe_ref[...].astype(x_ref.dtype)
    o_ref[...] = x_ref[...] + pe[:, None, :]


def _round_up(x: int, m: int) -> int:
    return (x + m - 1) // m * m


def _choose_tiles(S: int, B: int, D: int, x_dtype,
                  target_bytes: int = 4 * 1024 * 1024):
    """Pick (seq_tile, batch_tile) so one padded x block is ~target_bytes.

    Constraints:
      * x block's 2nd-to-last dim (batch tile) is a multiple of the dtype's
        sublane packing (8 f32 / 16 bf16 / 32 int8) or the full batch dim.
      * pe block's 2nd-to-last dim (seq tile) is a multiple of 8 (pe is f32).
      * d_model is always kept whole (lane-dense when D % 128 == 0).
    VMEM footprint per grid step ~= 2*in + 2*out + 1*(broadcast temp)
    ~= 5 * target_bytes, which fits the explicit 28 MiB vmem limit below.
    """
    itemsize = jnp.dtype(x_dtype).itemsize
    sub_b = max(8, 32 // itemsize)          # sublane packing for x's batch axis
    min_ts = 8                              # pe is f32 -> seq tile multiple of 8
    d_pad = _round_up(max(D, 1), 128)       # lane padding
    b_pad = _round_up(max(B, 1), sub_b)     # sublane padding
    row_bytes = b_pad * d_pad * itemsize    # padded VMEM bytes per seq position

    if row_bytes * min_ts <= target_bytes:
        # Full batch fits in one block; tile only over seq.
        tb = B
        ts = max(min_ts, (target_bytes // row_bytes) // min_ts * min_ts)
        ts = min(ts, _round_up(S, min_ts))
    else:
        # Huge batch*d_model: also tile over batch (inner grid axis).
        ts = min_ts
        tb_budget = target_bytes // (ts * d_pad * itemsize)
        tb = max(sub_b, (tb_budget // sub_b) * sub_b)
        tb = min(tb, _round_up(B, sub_b))

    # v7x megacore: guarantee >=2 "parallel" grid points when the shape allows,
    # so the grid can be sharded across both TensorCores.
    if pl.cdiv(S, ts) * pl.cdiv(B, tb) < 2:
        if S > min_ts:
            ts = _round_up(pl.cdiv(S, 2), min_ts)
        elif B > sub_b:
            tb = _round_up(pl.cdiv(B, 2), sub_b)
    return ts, tb


def positional_encoding_forward(x: jnp.ndarray, pe: jnp.ndarray,
                                *, donate_x: bool = False) -> jnp.ndarray:
    """x: [seq_len, batch, d_model]; pe: full [max_len, d_model] f32 buffer.

    `donate_x=True` aliases the output onto x's HBM buffer
    (input_output_aliases) -- same bytes moved, but no second S*B*D allocation
    when x can be donated inside a larger jitted graph.
    """
    seq_len, batch, d_model = x.shape
    assert pe.shape[1] == d_model and pe.shape[0] >= seq_len

    ts, tb = _choose_tiles(seq_len, batch, d_model, x.dtype)
    grid = (pl.cdiv(seq_len, ts), pl.cdiv(batch, tb))  # batch = inner axis

    return pl.pallas_call(
        _pe_add_kernel,
        out_shape=jax.ShapeDtypeStruct((seq_len, batch, d_model), x.dtype),
        grid=grid,
        in_specs=[
            pl.BlockSpec((ts, tb, d_model), lambda s, b: (s, b, 0)),
            # Full f32 pe buffer: only the first ceil(S/ts) row-blocks are
            # fetched; index_map is independent of the inner (batch) grid
            # axis, so the pe DMA is skipped on consecutive batch tiles.
            pl.BlockSpec((ts, d_model), lambda s, b: (s, 0)),
        ],
        out_specs=pl.BlockSpec((ts, tb, d_model), lambda s, b: (s, b, 0)),
        compiler_params=pltpu.CompilerParams(
            dimension_semantics=("parallel", "parallel"),
            # Explicit limit: holds double-buffered 4 MiB in+out blocks plus
            # the pe broadcast temp on every generation (v5e default is 16 MiB).
            vmem_limit_bytes=28 * 1024 * 1024,
        ),
        input_output_aliases=({0: 0} if donate_x else {}),
    )(x, pe)


if __name__ == "__main__":
    d_model = 32
    max_len = 50
    seq_len = 8
    batch = 2

    key = jax.random.PRNGKey(0)
    x = jax.random.normal(key, (seq_len, batch, d_model), dtype=jnp.float32)

    pe = _build_pe(d_model, max_len)

    out = jax.block_until_ready(positional_encoding_forward(x, pe))
    ref = x + pe[:seq_len][:, None, :]
    assert out.shape == (seq_len, batch, d_model)
    assert jnp.allclose(out, ref, atol=1e-6), "mismatch vs reference"

    # Non-multiple (partial tail block) shape: exercises seq-tile masking.
    x2 = jax.random.normal(jax.random.PRNGKey(1), (13, 3, d_model),
                           dtype=jnp.float32)
    out2 = jax.block_until_ready(positional_encoding_forward(x2, pe))
    ref2 = x2 + pe[:13][:, None, :]
    assert jnp.allclose(out2, ref2, atol=1e-6), "mismatch vs reference (tail)"

    print("KERNEL_OK")
</pallas_src>

<mosaic_0001>
module attributes {stable_mosaic.version = 11 : i64} {
  func.func @_pe_add_kernel(%arg0: i32, %arg1: i32, %arg2: memref<8x2x32xf32, #tpu.memory_space<vmem>>, %arg3: memref<8x32xf32, #tpu.memory_space<vmem>>, %arg4: memref<8x2x32xf32, #tpu.memory_space<vmem>>) attributes {dimension_semantics = [#tpu.dimension_semantics<parallel>, #tpu.dimension_semantics<parallel>], iteration_bounds = array<i64: 1, 1>, scalar_prefetch = 0 : i64, scratch_operands = 0 : i64, tpu.core_type = #tpu.core_type<tc>, window_params = [{transform_indices = @transform_0, window_bounds = array<i64: 8, 2, 32>}, {transform_indices = @transform_1, window_bounds = array<i64: 8, 32>}, {transform_indices = @transform_2, window_bounds = array<i64: 8, 2, 32>}]} {
    %c0 = arith.constant 0 : index
    %c0_0 = arith.constant 0 : index
    %0 = vector.load %arg3[%c0, %c0_0] : memref<8x32xf32, #tpu.memory_space<vmem>>, vector<8x32xf32>
    %c0_1 = arith.constant 0 : index
    %c0_2 = arith.constant 0 : index
    %c0_3 = arith.constant 0 : index
    %1 = vector.load %arg2[%c0_1, %c0_2, %c0_3] : memref<8x2x32xf32, #tpu.memory_space<vmem>>, vector<8x2x32xf32>
    %2 = vector.shape_cast %0 : vector<8x32xf32> to vector<8x1x32xf32>
    %3 = vector.broadcast %2 : vector<8x1x32xf32> to vector<8x2x32xf32>
    %4 = arith.addf %1, %3 : vector<8x2x32xf32>
    %c0_4 = arith.constant 0 : index
    %c0_5 = arith.constant 0 : index
    %c0_6 = arith.constant 0 : index
    %5 = vector.load %arg4[%c0_4, %c0_5, %c0_6] : memref<8x2x32xf32, #tpu.memory_space<vmem>>, vector<8x2x32xf32>
    tpu.vector_store %arg4[%c0_4, %c0_5, %c0_6], %4 {strides = array<i32>} : memref<8x2x32xf32, #tpu.memory_space<vmem>>, vector<8x2x32xf32>,
    return
  }
  func.func @transform_0(%arg0: i32, %arg1: i32) -> (i32, i32, i32) {
    %c0_i32 = arith.constant 0 : i32
    %c0_i32_0 = arith.constant 0 : i32
    return %arg0, %arg1, %c0_i32 : i32, i32, i32
  }
  func.func @transform_1(%arg0: i32, %arg1: i32) -> (i32, i32) {
    %c0_i32 = arith.constant 0 : i32
    %c0_i32_0 = arith.constant 0 : i32
    return %arg0, %c0_i32 : i32, i32
  }
  func.func @transform_2(%arg0: i32, %arg1: i32) -> (i32, i32, i32) {
    %c0_i32 = arith.constant 0 : i32
    %c0_i32_0 = arith.constant 0 : i32
    return %arg0, %arg1, %c0_i32 : i32, i32, i32
  }
}

</mosaic_0001>

<llo_original>
// kernel: tpu_custom_call.1
$region0: #{tpu_custom_call.1}
  #allocation0 [shape = 'u32[]', space=smem, size = 0x4, offset = 0x4, fixed_abs, tag = 'smem constant byte address 0x4 - core index']
  #allocation1 [shape = 'u32[144,128]{1,0:T(1,128)}', space=vmem, size = 0x12000, scoped, tag = 'internal scratch']
  %s0 = inlined_call_operand.vmem [shape: f32[8,2,32], index: 0, kind: input, shape index: {}]
  %s1 = inlined_call_operand.vmem [shape: f32[50,32], index: 1, kind: input, shape index: {}]
  %s2 = inlined_call_operand.hbm [shape: f32[8,2,32], index: 2, kind: output, shape index: {}]
  %s3 = sld [smem:[#allocation0]]
  $region18: #{tpu_custom_call.1} parent=0
    _
  %s5 = ssub.s32 1, %s3
  %s6 = scalar_select 0, %s5, %s3
  $region1: #{tpu_custom_call.1} parent=0
    #allocation2 [shape = 'u8[8192]{0}', space=vmem, size = 0x2000, scoped, tag = 'output window, operand 0, single buffered']
    #allocation3 [shape = 's32[1]{0}', space=sflag, size = 0x4, scoped, tag = 'scoped memory for tpu_custom_call.1']
    %7 = vsyncpa [#allocation3], 0
    // Predicated region
    $region2: #{tpu_custom_call.1} parent=1 // pred_check
      _
    $region3: #{tpu_custom_call.1} parent=1 // pred_check_branch
      %9 = sbr.rel (0) target = $region5
    $region4: #{tpu_custom_call.1} parent=1 // pred_region
      _
    $region5: #{tpu_custom_call.1} parent=1 // pred_fallthru
      _
    // Predicated region
    $region6: #{tpu_custom_call.1} parent=1 // pred_check
      _
    $region7: #{tpu_custom_call.1} parent=1 // pred_check_branch
      %11 = sbr.rel (0) target = $region9
    $region8: #{tpu_custom_call.1} parent=1 // pred_region
      _
    $region9: #{tpu_custom_call.1} parent=1 // pred_fallthru
      _
    %v12 = vld [vmem:[%s1] sm:$0xff]
    %v13 = vld [vmem:[%s0] sm:$0x3]
    %v14 = vld [vmem:[%s0 + $0x2] sm:$0x3]
    %v15 = vld [vmem:[%s0 + $0x4] sm:$0x3]
    %v16 = vld [vmem:[%s0 + $0x6] sm:$0x3]
    %v17 = vld [vmem:[%s0 + $0x8] sm:$0x3]
    %v18 = vld [vmem:[%s0 + $0xa] sm:$0x3]
    %v19 = vld [vmem:[%s0 + $0xc] sm:$0x3]
    %v20 = vld [vmem:[%s0 + $0xe] sm:$0x3]
    %v22 = vcombine.high %v12, %v12
    %v24 = vunpack.c.l.s4 1966171168
    %v25 = vunpack.c.0.s8 %v24
    %v26 = vlaneseq
    %v27 = vshrl.u32 %v26, 7
    %v28 = vsub.s32 %v25, %v27
    %v29 = vrot.slane %v12, %v28
    %v31 = vunpack.c.l.s4 1966171168
    %v32 = vunpack.c.0.s8 %v31
    %v33 = vlaneseq
    %v34 = vshrl.u32 %v33, 7
    %v35 = vsub.s32 %v32, %v34
    %v36 = vrot.slane %v22, %v35
    %v37 = vcombine.high %v29, %v29
    %v38 = vcombine.high %v36, %v36
    %v40 = vunpack.c.l.s4 1966171168
    %v41 = vunpack.c.0.s8 %v40
    %v42 = vlaneseq
    %v43 = vshrl.u32 %v42, 7
    %v44 = vsub.s32 %v41, %v43
    %v45 = vrot.slane %v29, %v44
    %v47 = vunpack.c.l.s4 1966171168
    %v48 = vunpack.c.0.s8 %v47
    %v49 = vlaneseq
    %v50 = vshrl.u32 %v49, 7
    %v51 = vsub.s32 %v48, %v50
    %v52 = vrot.slane %v36, %v51
    %v54 = vunpack.c.l.s4 1966171168
    %v55 = vunpack.c.0.s8 %v54
    %v56 = vlaneseq
    %v57 = vshrl.u32 %v56, 7
    %v58 = vsub.s32 %v55, %v57
    %v59 = vrot.slane %v37, %v58
    %v61 = vunpack.c.l.s4 1966171168
    %v62 = vunpack.c.0.s8 %v61
    %v63 = vlaneseq
    %v64 = vshrl.u32 %v63, 7
    %v65 = vsub.s32 %v62, %v64
    %v66 = vrot.slane %v38, %v65
    %v67 = vcombine.high %v45, %v45
    %v68 = vcombine.high %v52, %v52
    %v69 = vcombine.high %v59, %v59
    %v70 = vcombine.high %v66, %v66
    %v71 = vlaneseq
    %v72 = vshrl.u32 %v71, 7
    %v73 = vsub.s32 0, %v72
    %v74 = vrot.slane %v45, %v73
    %v75 = vlaneseq
    %v76 = vshrl.u32 %v75, 7
    %v77 = vsub.s32 0, %v76
    %v78 = vrot.slane %v59, %v77
    %v79 = vlaneseq
    %v80 = vshrl.u32 %v79, 7
    %v81 = vsub.s32 0, %v80
    %v82 = vrot.slane %v67, %v81
    %v83 = vlaneseq
    %v84 = vshrl.u32 %v83, 7
    %v85 = vsub.s32 0, %v84
    %v86 = vrot.slane %v69, %v85
    %v87 = vlaneseq
    %v88 = vshrl.u32 %v87, 7
    %v89 = vsub.s32 0, %v88
    %v90 = vrot.slane %v52, %v89
    %v91 = vlaneseq
    %v92 = vshrl.u32 %v91, 7
    %v93 = vsub.s32 0, %v92
    %v94 = vrot.slane %v66, %v93
    %v95 = vlaneseq
    %v96 = vshrl.u32 %v95, 7
    %v97 = vsub.s32 0, %v96
    %v98 = vrot.slane %v68, %v97
    %v99 = vlaneseq
    %v100 = vshrl.u32 %v99, 7
    %v101 = vsub.s32 0, %v100
    %v102 = vrot.slane %v70, %v101
    %v111 = vadd.f32 %v13, %v74
    %v112 = vadd.f32 %v14, %v78
    %v113 = vadd.f32 %v15, %v82
    %v114 = vadd.f32 %v16, %v86
    %v115 = vadd.f32 %v17, %v90
    %v116 = vadd.f32 %v18, %v94
    %v117 = vadd.f32 %v19, %v98
    %v118 = vadd.f32 %v20, %v102
    %vm119 = vcmask 254976
    %120 = vst.msk [vmem:[#allocation2] sm:$0x3] %vm119, %v111
    %121 = vst.msk [vmem:[#allocation2 + $0x2] sm:$0x3] %vm119, %v112
    %122 = vst.msk [vmem:[#allocation2 + $0x4] sm:$0x3] %vm119, %v113
    %123 = vst.msk [vmem:[#allocation2 + $0x6] sm:$0x3] %vm119, %v114
    %124 = vst.msk [vmem:[#allocation2 + $0x8] sm:$0x3] %vm119, %v115
    %125 = vst.msk [vmem:[#allocation2 + $0xa] sm:$0x3] %vm119, %v116
    %126 = vst.msk [vmem:[#allocation2 + $0xc] sm:$0x3] %vm119, %v117
    %127 = vst.msk [vmem:[#allocation2 + $0xe] sm:$0x3] %vm119, %v118
    // Predicated region
    $region10: #{tpu_custom_call.1} parent=1 // pred_check
      _
    $region11: #{tpu_custom_call.1} parent=1 // pred_check_branch
      %129 = sbr.rel (0) target = $region13
    $region12: #{tpu_custom_call.1} parent=1 // pred_region
      %s131 = ssub.s32 256, 256
      %132 = vsyncadd [#allocation3], %s131
      %s133 = sshll.u32 [#allocation2], 4
      %s134 = int_to_ptr.vmem [resolvable:$true] %s133
      %139 = dma.vmem_to_hbm [thread:$0]  %s134, 256, %s2, [#allocation3], 32, 32, 2
    $region13: #{tpu_custom_call.1} parent=1 // pred_fallthru
      _
    // Predicated region
    $region14: #{tpu_custom_call.1} parent=1 // pred_check
      _
    $region15: #{tpu_custom_call.1} parent=1 // pred_check_branch
      %141 = sbr.rel (0) target = $region17
    $region16: #{tpu_custom_call.1} parent=1 // pred_region
      %142 = dma.done [#allocation3], 256
    $region17: #{tpu_custom_call.1} parent=1 // pred_fallthru
      _
    %143 = vsyncpa [#allocation3], 1

</llo_original>
